<compile_context>
chip_gen: v5e
topology: v5e:2x2
jax: 0.10.0
libtpu: 0.0.40
codegen_flags: <defaults>
</compile_context>

<pallas_src>
import functools

import jax
import jax.numpy as jnp
from jax.experimental import pallas as pl
from jax.experimental.pallas import tpu as pltpu


def _interp_matrix(in_size: int, out_size: int, align_corners: bool) -> jnp.ndarray:
    """(out_size, in_size) 1-D linear interpolation matrix, PyTorch semantics."""
    dst = jnp.arange(out_size, dtype=jnp.float32)
    if align_corners:
        if out_size == 1:
            src = jnp.zeros((out_size,), jnp.float32)
        else:
            src = dst * ((in_size - 1) / (out_size - 1))
    else:
        scale = in_size / out_size
        src = (dst + 0.5) * scale - 0.5
        src = jnp.maximum(src, 0.0)  # PyTorch clamps negative src to 0
    i0 = jnp.clip(jnp.floor(src).astype(jnp.int32), 0, in_size - 1)
    i1 = jnp.clip(i0 + 1, 0, in_size - 1)
    lam = src - i0.astype(jnp.float32)
    rows = jnp.arange(out_size)
    w = jnp.zeros((out_size, in_size), jnp.float32)
    w = w.at[rows, i0].add(1.0 - lam)
    w = w.at[rows, i1].add(lam)
    return w


def _interp_kernel(x_ref, whb_ref, wwt_ref, o_ref, *, compute_dtype):
    # x_ref:   (TB*Hin, Win)        TB flattened (batch*channel) slabs
    # whb_ref: (TB*Hout, TB*Hin)    block-diagonal row-interp matrix
    # wwt_ref: (Win, Wout)          column-interp matrix (transposed)
    # o_ref:   (TB*Hout, Wout)
    x = x_ref[...].astype(compute_dtype)
    # H-interpolation for all TB slabs in one big MXU matmul.
    tmp = jnp.dot(whb_ref[...], x, preferred_element_type=jnp.float32)      # (TB*Hout, Win) f32
    # W-interpolation, again a single big matmul.
    out = jnp.dot(tmp.astype(compute_dtype), wwt_ref[...],
                  preferred_element_type=jnp.float32)                       # (TB*Hout, Wout)
    o_ref[...] = out.astype(o_ref.dtype)


def _choose_tb(bc, h_in, w_in, h_out, w_out, io_bytes, w_bytes,
               vmem_budget=32 * 1024 * 1024, tb_cap=16):
    """Pick slabs-per-block: legal blocking, fits VMEM, prefers >=2 grid steps."""
    def legal(tb):
        # last-two block dims must be multiples of (8,·) unless they equal full dims
        ok_in = (tb == bc) or ((tb * h_in) % 8 == 0)
        ok_out = (tb == bc) or ((tb * h_out) % 8 == 0)
        return ok_in and ok_out

    def fits(tb):
        in_blk = 2 * tb * h_in * w_in * io_bytes          # double-buffered input
        out_blk = 2 * tb * h_out * w_out * io_bytes       # double-buffered output
        whb = tb * tb * h_out * h_in * w_bytes            # block-diag H weights
        wwt = w_in * w_out * w_bytes
        tmp = tb * h_out * w_in * 4                       # f32 intermediate
        return in_blk + out_blk + whb + wwt + tmp <= vmem_budget

    divs = [d for d in range(1, bc + 1) if bc % d == 0]
    pool = [d for d in divs if legal(d)] or [bc]
    fitting = [d for d in pool if fits(d)] or [min(pool)]
    capped = [d for d in fitting if d <= tb_cap] or [min(fitting)]
    multi = [d for d in capped if bc // d >= 2] or capped  # keep >=2 steps for megacore
    return max(multi)


@functools.partial(
    jax.jit,
    static_argnames=("size", "scale", "mode", "align_corners", "compute_dtype"))
def interpolate(x, size=None, scale=None, mode="bilinear", align_corners=False,
                compute_dtype=jnp.bfloat16):
    """Pallas equivalent of Interpolate.forward(x). x is NCHW."""
    assert (size is None) == (scale is not None)
    assert mode == "bilinear", "only bilinear is implemented"
    n, c, h_in, w_in = x.shape
    if size is not None:
        h_out, w_out = (size, size) if isinstance(size, int) else tuple(size)
    else:
        sh, sw = (scale, scale) if isinstance(scale, (int, float)) else tuple(scale)
        h_out, w_out = int(h_in * sh), int(w_in * sw)

    compute_dtype = jnp.dtype(compute_dtype)
    wh = _interp_matrix(h_in, h_out, align_corners)              # (Hout, Hin) f32
    wwt = _interp_matrix(w_in, w_out, align_corners).T           # (Win, Wout) f32

    bc = n * c
    tb = _choose_tb(bc, h_in, w_in, h_out, w_out,
                    io_bytes=x.dtype.itemsize,
                    w_bytes=compute_dtype.itemsize)
    n_blk = bc // tb

    # Block-diagonal H-interp matrix: lets one MXU matmul handle all tb slabs.
    whb = jnp.kron(jnp.eye(tb, dtype=jnp.float32), wh).astype(compute_dtype)   # (tb*Hout, tb*Hin)
    wwt = wwt.astype(compute_dtype)

    x_flat = x.reshape(bc * h_in, w_in)     # free row-major reshape

    flops = (2 * n_blk * (tb * h_out) * (tb * h_in) * w_in
             + 2 * n_blk * (tb * h_out) * w_in * w_out)
    bytes_accessed = (bc * h_in * w_in * x.dtype.itemsize
                      + bc * h_out * w_out * x.dtype.itemsize
                      + n_blk * (whb.size + wwt.size) * compute_dtype.itemsize)

    out_flat = pl.pallas_call(
        functools.partial(_interp_kernel, compute_dtype=compute_dtype),
        out_shape=jax.ShapeDtypeStruct((bc * h_out, w_out), x.dtype),
        grid_spec=pltpu.PrefetchScalarGridSpec(
            num_scalar_prefetch=0,
            grid=(n_blk,),
            in_specs=[
                pl.BlockSpec((tb * h_in, w_in), lambda g: (g, 0)),
                pl.BlockSpec((tb * h_out, tb * h_in), lambda g: (0, 0)),
                pl.BlockSpec((w_in, w_out), lambda g: (0, 0)),
            ],
            out_specs=pl.BlockSpec((tb * h_out, w_out), lambda g: (g, 0)),
        ),
        compiler_params=pltpu.CompilerParams(
            dimension_semantics=("parallel",),
            vmem_limit_bytes=48 * 1024 * 1024,
        ),
        cost_estimate=pl.CostEstimate(
            flops=flops, transcendentals=0, bytes_accessed=bytes_accessed),
    )(x_flat, whb, wwt)

    return out_flat.reshape(n, c, h_out, w_out)


if __name__ == "__main__":
    key = jax.random.PRNGKey(0)
    # Small NCHW input consistent with the module's forward.
    x = jax.random.normal(key, (2, 4, 16, 16), dtype=jnp.float32)

    # Interpolate(scale=2, mode='bilinear', align_corners=False), default bf16 MXU path.
    out = interpolate(x, size=None, scale=2.0, mode="bilinear", align_corners=False)
    out = jax.block_until_ready(out)
    assert out.shape == (2, 4, 32, 32), out.shape

    # Pure-JAX reference (same separable formulation, f32 weights).
    wh = _interp_matrix(16, 32, False)
    ww = _interp_matrix(16, 32, False)
    ref = jnp.einsum("oh,nchw,pw->ncop", wh, x, ww)

    # bf16 compute path -> loose tolerance.
    assert jnp.allclose(out, ref, atol=5e-2, rtol=5e-2), \
        float(jnp.max(jnp.abs(out - ref)))

    # f32 compute path (also exercises the `size=` branch) -> tight tolerance.
    out32 = interpolate(x, size=(32, 32), mode="bilinear", align_corners=False,
                        compute_dtype=jnp.float32)
    out32 = jax.block_until_ready(out32)
    assert out32.shape == (2, 4, 32, 32), out32.shape
    assert jnp.allclose(out32, ref, atol=1e-5, rtol=1e-5), \
        float(jnp.max(jnp.abs(out32 - ref)))

    print("KERNEL_OK")
</pallas_src>

<mosaic_0001>
module attributes {stable_mosaic.version = 11 : i64} {
  func.func @_interp_kernel(%arg0: i32, %arg1: memref<64x16xf32, #tpu.memory_space<vmem>>, %arg2: memref<128x64xbf16, #tpu.memory_space<vmem>>, %arg3: memref<16x32xbf16, #tpu.memory_space<vmem>>, %arg4: memref<128x32xf32, #tpu.memory_space<vmem>>) attributes {dimension_semantics = [#tpu.dimension_semantics<parallel>], iteration_bounds = array<i64: 2>, scalar_prefetch = 0 : i64, scratch_operands = 0 : i64, tpu.core_type = #tpu.core_type<tc>, window_params = [{transform_indices = @transform_0, window_bounds = array<i64: 64, 16>}, {pipeline_mode = #tpu.pipeline_mode<synchronous>, transform_indices = @transform_1, window_bounds = array<i64: 128, 64>}, {pipeline_mode = #tpu.pipeline_mode<synchronous>, transform_indices = @transform_2, window_bounds = array<i64: 16, 32>}, {transform_indices = @transform_3, window_bounds = array<i64: 128, 32>}]} {
    %c0 = arith.constant 0 : index
    %c0_0 = arith.constant 0 : index
    %0 = vector.load %arg1[%c0, %c0_0] : memref<64x16xf32, #tpu.memory_space<vmem>>, vector<64x16xf32>
    %1 = arith.truncf %0 : vector<64x16xf32> to vector<64x16xbf16>
    %c0_1 = arith.constant 0 : index
    %c0_2 = arith.constant 0 : index
    %2 = vector.load %arg2[%c0_1, %c0_2] : memref<128x64xbf16, #tpu.memory_space<vmem>>, vector<128x64xbf16>
    %cst = arith.constant dense<0.000000e+00> : vector<128x16xf32>
    %3 = tpu.matmul %2, %1, %cst {dimension_numbers = #tpu.dot_dimension_numbers<[1], [0], [0], [1], [0, 0, 1, 1], [], []>} : vector<128x64xbf16>, vector<64x16xbf16>, vector<128x16xf32> -> vector<128x16xf32>
    %4 = arith.truncf %3 : vector<128x16xf32> to vector<128x16xbf16>
    %c0_3 = arith.constant 0 : index
    %c0_4 = arith.constant 0 : index
    %5 = vector.load %arg3[%c0_3, %c0_4] : memref<16x32xbf16, #tpu.memory_space<vmem>>, vector<16x32xbf16>
    %cst_5 = arith.constant dense<0.000000e+00> : vector<128x32xf32>
    %6 = tpu.matmul %4, %5, %cst_5 {dimension_numbers = #tpu.dot_dimension_numbers<[1], [0], [0], [1], [0, 0, 1, 1], [], []>} : vector<128x16xbf16>, vector<16x32xbf16>, vector<128x32xf32> -> vector<128x32xf32>
    %c0_6 = arith.constant 0 : index
    %c0_7 = arith.constant 0 : index
    %7 = vector.load %arg4[%c0_6, %c0_7] : memref<128x32xf32, #tpu.memory_space<vmem>>, vector<128x32xf32>
    tpu.vector_store %arg4[%c0_6, %c0_7], %6 {strides = array<i32>} : memref<128x32xf32, #tpu.memory_space<vmem>>, vector<128x32xf32>,
    return
  }
  func.func @transform_0(%arg0: i32) -> (i32, i32) {
    %c0_i32 = arith.constant 0 : i32
    %c0_i32_0 = arith.constant 0 : i32
    return %arg0, %c0_i32 : i32, i32
  }
  func.func @transform_1(%arg0: i32) -> (i32, i32) {
    %c0_i32 = arith.constant 0 : i32
    %c0_i32_0 = arith.constant 0 : i32
    %c0_i32_1 = arith.constant 0 : i32
    return %c0_i32, %c0_i32_0 : i32, i32
  }
  func.func @transform_2(%arg0: i32) -> (i32, i32) {
    %c0_i32 = arith.constant 0 : i32
    %c0_i32_0 = arith.constant 0 : i32
    %c0_i32_1 = arith.constant 0 : i32
    return %c0_i32, %c0_i32_0 : i32, i32
  }
  func.func @transform_3(%arg0: i32) -> (i32, i32) {
    %c0_i32 = arith.constant 0 : i32
    %c0_i32_0 = arith.constant 0 : i32
    return %arg0, %c0_i32 : i32, i32
  }
}

</mosaic_0001>

<llo_original>
// kernel: interpolate.1
$region0: #{interpolate.1}
  #allocation0 [shape = 'u32[]', space=smem, size = 0x4, offset = 0x4, fixed_abs, tag = 'smem constant byte address 0x4 - core index']
  #allocation1 [shape = 'u32[72,128]{1,0:T(1,128)}', space=vmem, size = 0x9000, scoped, tag = 'internal scratch']
  %s0 = inlined_call_operand.vmem [shape: f32[128,16], index: 0, kind: input, shape index: {}]
  %s1 = inlined_call_operand.vmem [shape: bf16[128,64], index: 1, kind: input, shape index: {}]
  %s2 = inlined_call_operand.vmem [shape: bf16[16,32], index: 2, kind: input, shape index: {}]
  %s3 = inlined_call_operand.hbm [shape: f32[256,32], index: 3, kind: output, shape index: {}]
  %s4 = sld [smem:[#allocation0]]
  $region45: #{interpolate.1} parent=0
    _
  %s6 = ssub.s32 1, %s4
  %s7 = scalar_select 0, %s6, %s4
  $region1: #{interpolate.1} parent=0
    #allocation2 [shape = 'u8[131072]{0}', space=vmem, size = 0x20000, scoped, tag = 'output window, operand 0']
    #allocation3 [shape = 's32[2]{0}', space=sflag, size = 0x8, scoped, tag = 'scoped memory for interpolate.1']
    %8 = vsyncpa [#allocation3], 0
    %s9 = scalar_lea.sflag [#allocation3], 1
    %10 = vsyncpa %s9, 0
    loop: start=0, step=1, limit=4
    $region2: #{interpolate.1} parent=1 // loop_pre_header
      _
    $region3: #{interpolate.1} parent=1 // loop_header
      %s12 = sphi 0, %s16
      %p13 = scmp.ge.s32.totalorder %s12, 4
      %s22 = sphi 0, %s24
      %s25 = sphi 0, %s22
      %s26 = sphi 0, %s25
      %s42 = sphi 0, %s26
      %s46 = sphi 0, %s46
      %s48 = sphi 0, %s46
      %s49 = sphi 0, %s48
      %s63 = sphi 0, %s49
      %s67 = sphi 0, %s67
      %s69 = sphi 0, %s67
      %s70 = sphi 0, %s69
      %s84 = sphi 0, %s70
      %s90 = sphi 0, %s92
      %s93 = sphi 0, %s90
      %s94 = sphi 0, %s93
      %s110 = sphi 0, %s94
    $region4: #{interpolate.1} parent=1 // loop_header_branch
      %15 = sbr.rel (%p13) target = $region8
    $region5: #{interpolate.1} parent=1 // loop_body
      %s17 = ssub.s32 %s12, 1
      %s18 = ssub.s32 %s12, 2
      %s19 = sadd.s32 %s12, 1
      %s20 = ssub.s32 %s12, %s19
      %p21 = scmp.eq.s32.totalorder %s20, 0
      %s23 = sadd.s32 %s22, 1
      %s24 = scalar_select %p21, %s22, %s23
      %p27 = pneg %p21
      %p28 = scmp.eq.s32.totalorder %s12, 1
      %p29 = por %p27, %p28
      %p30 = scmp.ne.s32.totalorder %s22, %s25
      %p31 = scmp.eq.s32.totalorder %s12, 0
      %p32 = por %p30, %p31
      %p33 = scmp.ne.s32.totalorder %s22, %s25
      %p34 = scmp.eq.s32.totalorder %s17, 1
      %p35 = por %p33, %p34
      %p36 = scmp.ne.s32.totalorder %s25, %s26
      %p37 = scmp.eq.s32.totalorder %s17, 0
      %p38 = por %p36, %p37
      %p39 = scmp.ne.s32.totalorder %s25, %s26
      %p40 = scmp.eq.s32.totalorder %s18, 1
      %p41 = por %p39, %p40
      %p43 = scmp.ne.s32.totalorder %s26, %s42
      %p44 = scmp.eq.s32.totalorder %s18, 0
      %p45 = por %p43, %p44
      %s47 = sadd.s32 %s46, 1
      %p50 = scmp.eq.s32.totalorder %s12, 1
      %p51 = scmp.ne.s32.totalorder %s46, %s48
      %p52 = scmp.eq.s32.totalorder %s12, 0
      %p53 = por %p51, %p52
      %p54 = scmp.ne.s32.totalorder %s46, %s48
      %p55 = scmp.eq.s32.totalorder %s17, 1
      %p56 = por %p54, %p55
      %p57 = scmp.ne.s32.totalorder %s48, %s49
      %p58 = scmp.eq.s32.totalorder %s17, 0
      %p59 = por %p57, %p58
      %p60 = scmp.ne.s32.totalorder %s48, %s49
      %p61 = scmp.eq.s32.totalorder %s18, 1
      %p62 = por %p60, %p61
      %p64 = scmp.ne.s32.totalorder %s49, %s63
      %p65 = scmp.eq.s32.totalorder %s18, 0
      %p66 = por %p64, %p65
      %s68 = sadd.s32 %s67, 1
      %p71 = scmp.eq.s32.totalorder %s12, 1
      %p72 = scmp.ne.s32.totalorder %s67, %s69
      %p73 = scmp.eq.s32.totalorder %s12, 0
      %p74 = por %p72, %p73
      %p75 = scmp.ne.s32.totalorder %s67, %s69
      %p76 = scmp.eq.s32.totalorder %s17, 1
      %p77 = por %p75, %p76
      %p78 = scmp.ne.s32.totalorder %s69, %s70
      %p79 = scmp.eq.s32.totalorder %s17, 0
      %p80 = por %p78, %p79
      %p81 = scmp.ne.s32.totalorder %s69, %s70
      %p82 = scmp.eq.s32.totalorder %s18, 1
      %p83 = por %p81, %p82
      %p85 = scmp.ne.s32.totalorder %s70, %s84
      %p86 = scmp.eq.s32.totalorder %s18, 0
      %p87 = por %p85, %p86
      %s88 = ssub.s32 %s12, %s19
      %p89 = scmp.eq.s32.totalorder %s88, 0
      %s91 = sadd.s32 %s90, 1
      %s92 = scalar_select %p89, %s90, %s91
      %p95 = pneg %p89
      %p96 = scmp.eq.s32.totalorder %s12, 1
      %p97 = por %p95, %p96
      %p98 = scmp.ne.s32.totalorder %s90, %s93
      %p99 = scmp.eq.s32.totalorder %s12, 0
      %p100 = por %p98, %p99
      %p101 = scmp.ne.s32.totalorder %s90, %s93
      %p102 = scmp.eq.s32.totalorder %s17, 1
      %p103 = por %p101, %p102
      %p104 = scmp.ne.s32.totalorder %s93, %s94
      %p105 = scmp.eq.s32.totalorder %s17, 0
      %p106 = por %p104, %p105
      %p107 = scmp.ne.s32.totalorder %s93, %s94
      %p108 = scmp.eq.s32.totalorder %s18, 1
      %p109 = por %p107, %p108
      %p111 = scmp.ne.s32.totalorder %s94, %s110
      %p112 = scmp.eq.s32.totalorder %s18, 0
      %p113 = por %p111, %p112
      %p114 = scmp.le.s32.totalorder 1, %s12
      %p115 = scmp.lt.s32.totalorder %s12, 3
      %p116 = pnand %p114, %p115
      %p117 = pneg %p116
      // Predicated region
      $region9: #{interpolate.1} parent=5 // pred_check
        _
      $region10: #{interpolate.1} parent=5 // pred_check_branch
        %119 = sbr.rel (%p116) target = $region12
      $region11: #{interpolate.1} parent=5 // pred_region
        %s120 = ssub.s32 %s12, 1
        // Predicated region
        $region13: #{interpolate.1} parent=11 // pred_check
          %p121 = pneg %p59
        $region14: #{interpolate.1} parent=11 // pred_check_branch
          %123 = sbr.rel (%p121) target = $region16
        $region15: #{interpolate.1} parent=11 // pred_region
          _
        $region16: #{interpolate.1} parent=11 // pred_fallthru
          _
        // Predicated region
        $region17: #{interpolate.1} parent=11 // pred_check
          %p124 = pneg %p80
        $region18: #{interpolate.1} parent=11 // pred_check_branch
          %126 = sbr.rel (%p124) target = $region20
        $region19: #{interpolate.1} parent=11 // pred_region
          _
        $region20: #{interpolate.1} parent=11 // pred_fallthru
          _
      $region12: #{interpolate.1} parent=5 // pred_fallthru
        _
      %p127 = scmp.lt.s32.totalorder %s12, 2
      // Predicated region
      $region21: #{interpolate.1} parent=5 // pred_check
        %p128 = pneg %p127
      $region22: #{interpolate.1} parent=5 // pred_check_branch
        %130 = sbr.rel (%p128) target = $region24
      $region23: #{interpolate.1} parent=5 // pred_region
        // Predicated region
        $region25: #{interpolate.1} parent=23 // pred_check
          %p131 = pneg %p32
        $region26: #{interpolate.1} parent=23 // pred_check_branch
          %133 = sbr.rel (%p131) target = $region28
        $region27: #{interpolate.1} parent=23 // pred_region
          %s134 = smul.u32 8, %s12
          %p135 = scmp.lt.s32.totalorder %s134, 15
          %s136 = scalar_select %p135, %s134, 15
          %s137 = smul.addr %s136, 8
          %s138 = scalar_lea.vmem %s0, %s137
          %s139 = smul.u32 8, %s12
        $region28: #{interpolate.1} parent=23 // pred_fallthru
          _
      $region24: #{interpolate.1} parent=5 // pred_fallthru
        _
      %p140 = scmp.le.s32.totalorder 1, %s12
      %p141 = scmp.lt.s32.totalorder %s12, 3
      %p142 = pnand %p140, %p141
      %p143 = pneg %p142
      // Predicated region
      $region29: #{interpolate.1} parent=5 // pred_check
        _
      $region30: #{interpolate.1} parent=5 // pred_check_branch
        %145 = sbr.rel (%p142) target = $region32
      $region31: #{interpolate.1} parent=5 // pred_region
        %s146 = ssub.s32 %s12, 1
        %s147 = smul.u32 8, %s17
        %p148 = scmp.lt.s32.totalorder %s147, 15
        %s149 = scalar_select %p148, %s147, 15
        %s150 = smul.addr %s149, 8
        %s151 = scalar_lea.vmem %s0, %s150
        %p152 = pneg %p38
        %p153 = pneg %p35
        %p154 = pneg %p59
        %p155 = pneg %p56
        %p156 = pneg %p80
        %p157 = pneg %p77
        %p158 = pneg %p106
        %p159 = pneg %p103
        %s160 = sand.u32 %s93, 1
        %s161 = scalar_lea.sflag [#allocation3], %s160
        %s162 = sand.u32 %s93, 1
        %s163 = smul.addr %s162, 128
        %s164 = scalar_lea.vmem [#allocation2], %s163
        %s165 = smul.u32 8, %s17
        %p166 = scmp.lt.s32.totalorder %s165, 15
        %s167 = scalar_select %p166, %s165, 15
        %s168 = smul.addr %s167, 8
        %s169 = scalar_lea.vmem %s0, %s168
        %s170 = smul.u32 8, %s17
        %s171 = smul.u32 16, %s17
        %v173 = vld [vmem:[%s169] sm:$0xff]
        %v174 = vld [vmem:[%s169 + $0x8] sm:$0xff]
        %v175 = vld [vmem:[%s169 + $0x10] sm:$0xff]
        %v176 = vld [vmem:[%s169 + $0x18] sm:$0xff]
        %v177 = vld [vmem:[%s169 + $0x20] sm:$0xff]
        %v178 = vld [vmem:[%s169 + $0x28] sm:$0xff]
        %v179 = vld [vmem:[%s169 + $0x30] sm:$0xff]
        %v180 = vld [vmem:[%s169 + $0x38] sm:$0xff]
        %v181 = vpack.c.bf16 %v174, %v173
        %v182 = vpack.c.bf16 %v176, %v175
        %v183 = vpack.c.bf16 %v178, %v177
        %v184 = vpack.c.bf16 %v180, %v179
        %v185 = vld [vmem:[%s1] sm:$0xf]
        %v186 = vld [vmem:[%s1 + $0x4] sm:$0xf]
        %v187 = vld [vmem:[%s1 + $0x8] sm:$0xf]
        %v188 = vld [vmem:[%s1 + $0xc] sm:$0xf]
        %v189 = vld [vmem:[%s1 + $0x10] sm:$0xf]
        %v190 = vld [vmem:[%s1 + $0x14] sm:$0xf]
        %v191 = vld [vmem:[%s1 + $0x18] sm:$0xf]
        %v192 = vld [vmem:[%s1 + $0x1c] sm:$0xf]
        %v193 = vld [vmem:[%s1 + $0x20] sm:$0xf]
        %v194 = vld [vmem:[%s1 + $0x24] sm:$0xf]
        %v195 = vld [vmem:[%s1 + $0x28] sm:$0xf]
        %v196 = vld [vmem:[%s1 + $0x2c] sm:$0xf]
        %v197 = vld [vmem:[%s1 + $0x30] sm:$0xf]
        %v198 = vld [vmem:[%s1 + $0x34] sm:$0xf]
        %v199 = vld [vmem:[%s1 + $0x38] sm:$0xf]
        %v200 = vld [vmem:[%s1 + $0x3c] sm:$0xf]
        %v217 = vunpack.c.l.b16 %v185
        %v218 = vunpack.c.l.b16 %v186
        %v219 = vunpack.c.l.b16 %v187
        %v220 = vunpack.c.l.b16 %v188
        %v221 = vunpack.c.l.b16 %v189
        %v222 = vunpack.c.l.b16 %v190
        %v223 = vunpack.c.l.b16 %v191
        %v224 = vunpack.c.l.b16 %v192
        %v225 = vunpack.c.l.b16 %v193
        %v226 = vunpack.c.l.b16 %v194
        %v227 = vunpack.c.l.b16 %v195
        %v228 = vunpack.c.l.b16 %v196
        %v229 = vunpack.c.l.b16 %v197
        %v230 = vunpack.c.l.b16 %v198
        %v231 = vunpack.c.l.b16 %v199
        %v232 = vunpack.c.l.b16 %v200
        %v233 = vpack.c.b16 %v218, %v217
        %v234 = vpack.c.b16 %v220, %v219
        %v235 = vpack.c.b16 %v222, %v221
        %v236 = vpack.c.b16 %v224, %v223
        %v237 = vpack.c.b16 %v226, %v225
        %v238 = vpack.c.b16 %v228, %v227
        %v239 = vpack.c.b16 %v230, %v229
        %v240 = vpack.c.b16 %v232, %v231
        %vm241 = vcmask 523264
        %v243 = vsel %vm241, %v233, 0
        %v246 = vsel %vm241, %v234, 0
        %v249 = vsel %vm241, %v235, 0
        %v252 = vsel %vm241, %v236, 0
        %v255 = vsel %vm241, %v237, 0
        %v258 = vsel %vm241, %v238, 0
        %v261 = vsel %vm241, %v239, 0
        %v264 = vsel %vm241, %v240, 0
        %266 = vmatpush.bf16.msra.mxu0 0
        %267 = vmatpush.bf16.msra.mxu0 0
        %268 = vmatpush.bf16.msra.mxu0 0
        %269 = vmatpush.bf16.msra.mxu0 0
        %270 = vmatpush.bf16.msra.mxu0 %v184
        %271 = vmatpush.bf16.msra.mxu0 %v183
        %272 = vmatpush.bf16.msra.mxu0 %v182
        %273 = vmatpush.bf16.msra.mxu0 %v181
        %274 = vmatmul.bf16.gmra.mxu0 %v243
        %v275 = vpop.f32.mrf.mxu0
        %v276 = vadd.f32 0.0, %v275
        %v277 = vpop.f32.mrf.mxu0
        %v278 = vadd.f32 0.0, %v277
        %279 = vmatmul.bf16.gmra.mxu0 %v246
        %v280 = vpop.f32.mrf.mxu0
        %v281 = vadd.f32 0.0, %v280
        %v282 = vpop.f32.mrf.mxu0
        %v283 = vadd.f32 0.0, %v282
        %284 = vmatmul.bf16.gmra.mxu0 %v249
        %v285 = vpop.f32.mrf.mxu0
        %v286 = vadd.f32 0.0, %v285
        %v287 = vpop.f32.mrf.mxu0
        %v288 = vadd.f32 0.0, %v287
        %289 = vmatmul.bf16.gmra.mxu0 %v252
        %v290 = vpop.f32.mrf.mxu0
        %v291 = vadd.f32 0.0, %v290
        %v292 = vpop.f32.mrf.mxu0
        %v293 = vadd.f32 0.0, %v292
        %294 = vmatmul.bf16.gmra.mxu0 %v255
        %v295 = vpop.f32.mrf.mxu0
        %v296 = vadd.f32 0.0, %v295
        %v297 = vpop.f32.mrf.mxu0
        %v298 = vadd.f32 0.0, %v297
        %299 = vmatmul.bf16.gmra.mxu0 %v258
        %v300 = vpop.f32.mrf.mxu0
        %v301 = vadd.f32 0.0, %v300
        %v302 = vpop.f32.mrf.mxu0
        %v303 = vadd.f32 0.0, %v302
        %304 = vmatmul.bf16.gmra.mxu0 %v261
        %v305 = vpop.f32.mrf.mxu0
        %v306 = vadd.f32 0.0, %v305
        %v307 = vpop.f32.mrf.mxu0
        %v308 = vadd.f32 0.0, %v307
        %309 = vmatmul.bf16.gmra.mxu0 %v264
        %v310 = vpop.f32.mrf.mxu0
        %v311 = vadd.f32 0.0, %v310
        %v312 = vpop.f32.mrf.mxu0
        %v313 = vadd.f32 0.0, %v312
        %314 = vdwg.mxu0
        %v315 = vpack.c.bf16 %v278, %v276
        %v316 = vpack.c.bf16 %v283, %v281
        %v317 = vpack.c.bf16 %v288, %v286
        %v318 = vpack.c.bf16 %v293, %v291
        %v319 = vpack.c.bf16 %v298, %v296
        %v320 = vpack.c.bf16 %v303, %v301
        %v321 = vpack.c.bf16 %v308, %v306
        %v322 = vpack.c.bf16 %v313, %v311
        %v323 = vld [vmem:[%s2] sm:$0xf]
        %v324 = vld [vmem:[%s2 + $0x4] sm:$0xf]
        %v327 = vunpack.c.l.b16 %v323
        %v328 = vunpack.c.l.b16 %v324
        %v329 = vpack.c.b16 %v328, %v327
        %vm331 = vcmask 130048
        %v333 = vsel %vm331, %v315, 0
        %v336 = vsel %vm331, %v316, 0
        %v339 = vsel %vm331, %v317, 0
        %v342 = vsel %vm331, %v318, 0
        %v345 = vsel %vm331, %v319, 0
        %v348 = vsel %vm331, %v320, 0
        %v351 = vsel %vm331, %v321, 0
        %v354 = vsel %vm331, %v322, 0
        %356 = vmatpush.bf16.msra.mxu0 0
        %357 = vmatpush.bf16.msra.mxu0 0
        %358 = vmatpush.bf16.msra.mxu0 0
        %359 = vmatpush.bf16.msra.mxu0 0
        %360 = vmatpush.bf16.msra.mxu0 0
        %361 = vmatpush.bf16.msra.mxu0 0
        %362 = vmatpush.bf16.msra.mxu0 0
        %363 = vmatpush.bf16.msra.mxu0 %v329
        %364 = vmatmul.bf16.gmra.mxu0 %v333
        %v365 = vpop.f32.mrf.mxu0
        %v366 = vadd.f32 0.0, %v365
        %v367 = vpop.f32.mrf.mxu0
        %v368 = vadd.f32 0.0, %v367
        %369 = vmatmul.bf16.gmra.mxu0 %v336
        %v370 = vpop.f32.mrf.mxu0
        %v371 = vadd.f32 0.0, %v370
        %v372 = vpop.f32.mrf.mxu0
        %v373 = vadd.f32 0.0, %v372
        %374 = vmatmul.bf16.gmra.mxu0 %v339
        %v375 = vpop.f32.mrf.mxu0
        %v376 = vadd.f32 0.0, %v375
        %v377 = vpop.f32.mrf.mxu0
        %v378 = vadd.f32 0.0, %v377
        %379 = vmatmul.bf16.gmra.mxu0 %v342
        %v380 = vpop.f32.mrf.mxu0
        %v381 = vadd.f32 0.0, %v380
        %v382 = vpop.f32.mrf.mxu0
        %v383 = vadd.f32 0.0, %v382
        %384 = vmatmul.bf16.gmra.mxu0 %v345
        %v385 = vpop.f32.mrf.mxu0
        %v386 = vadd.f32 0.0, %v385
        %v387 = vpop.f32.mrf.mxu0
        %v388 = vadd.f32 0.0, %v387
        %389 = vmatmul.bf16.gmra.mxu0 %v348
        %v390 = vpop.f32.mrf.mxu0
        %v391 = vadd.f32 0.0, %v390
        %v392 = vpop.f32.mrf.mxu0
        %v393 = vadd.f32 0.0, %v392
        %394 = vmatmul.bf16.gmra.mxu0 %v351
        %v395 = vpop.f32.mrf.mxu0
        %v396 = vadd.f32 0.0, %v395
        %v397 = vpop.f32.mrf.mxu0
        %v398 = vadd.f32 0.0, %v397
        %399 = vmatmul.bf16.gmra.mxu0 %v354
        %v400 = vpop.f32.mrf.mxu0
        %v401 = vadd.f32 0.0, %v400
        %v402 = vpop.f32.mrf.mxu0
        %v403 = vadd.f32 0.0, %v402
        %404 = vdwg.mxu0
        %vm405 = vcmask 261120
        %406 = vst.msk [vmem:[%s164] sm:$0xff] %vm405, %v366
        %407 = vst.msk [vmem:[%s164 + $0x8] sm:$0xff] %vm405, %v368
        %408 = vst.msk [vmem:[%s164 + $0x10] sm:$0xff] %vm405, %v371
        %409 = vst.msk [vmem:[%s164 + $0x18] sm:$0xff] %vm405, %v373
        %410 = vst.msk [vmem:[%s164 + $0x20] sm:$0xff] %vm405, %v376
        %411 = vst.msk [vmem:[%s164 + $0x28] sm:$0xff] %vm405, %v378
        %412 = vst.msk [vmem:[%s164 + $0x30] sm:$0xff] %vm405, %v381
        %413 = vst.msk [vmem:[%s164 + $0x38] sm:$0xff] %vm405, %v383
        %414 = vst.msk [vmem:[%s164 + $0x40] sm:$0xff] %vm405, %v386
        %415 = vst.msk [vmem:[%s164 + $0x48] sm:$0xff] %vm405, %v388
        %416 = vst.msk [vmem:[%s164 + $0x50] sm:$0xff] %vm405, %v391
        %417 = vst.msk [vmem:[%s164 + $0x58] sm:$0xff] %vm405, %v393
        %418 = vst.msk [vmem:[%s164 + $0x60] sm:$0xff] %vm405, %v396
        %419 = vst.msk [vmem:[%s164 + $0x68] sm:$0xff] %vm405, %v398
        %420 = vst.msk [vmem:[%s164 + $0x70] sm:$0xff] %vm405, %v401
        %421 = vst.msk [vmem:[%s164 + $0x78] sm:$0xff] %vm405, %v403
        %s422 = sand.u32 %s93, 1
        %s423 = scalar_lea.sflag [#allocation3], %s422
        %s424 = sand.u32 %s93, 1
        %s425 = smul.addr %s424, 128
        %s426 = scalar_lea.vmem [#allocation2], %s425
        // Predicated region
        $region33: #{interpolate.1} parent=31 // pred_check
          %p427 = pneg %p103
        $region34: #{interpolate.1} parent=31 // pred_check_branch
          %429 = sbr.rel (%p427) target = $region36
        $region35: #{interpolate.1} parent=31 // pred_region
          %s430 = smul.u32 16, %s17
          %432 = vsyncadd %s423, 0
          %s433 = smul.addr %s430, 8
          %s434 = scalar_lea.hbm %s3, %s433
          %s435 = sshll.u32 %s426, 4
          %s436 = int_to_ptr.vmem [resolvable:$true] %s435
          %s437 = sshll.u32 %s434, 4
          %s438 = int_to_ptr.hbm [resolvable:$true] %s437
          %443 = dma.vmem_to_hbm [thread:$0]  %s436, 2048, %s438, %s423, 128, 128, 8
        $region36: #{interpolate.1} parent=31 // pred_fallthru
          _
      $region32: #{interpolate.1} parent=5 // pred_fallthru
        _
      %p444 = scmp.le.s32.totalorder 2, %s12
      // Predicated region
      $region37: #{interpolate.1} parent=5 // pred_check
        %p445 = pneg %p444
      $region38: #{interpolate.1} parent=5 // pred_check_branch
        %447 = sbr.rel (%p445) target = $region40
      $region39: #{interpolate.1} parent=5 // pred_region
        %s448 = ssub.s32 %s12, 2
        // Predicated region
        $region41: #{interpolate.1} parent=39 // pred_check
          %p449 = pneg %p109
        $region42: #{interpolate.1} parent=39 // pred_check_branch
          %451 = sbr.rel (%p449) target = $region44
        $region43: #{interpolate.1} parent=39 // pred_region
          %s452 = sand.u32 %s94, 1
          %s453 = scalar_lea.sflag [#allocation3], %s452
          %s454 = sand.u32 %s94, 1
          %s455 = smul.addr %s454, 128
          %s456 = scalar_lea.vmem [#allocation2], %s455
          %458 = dma.done %s453, 2048
        $region44: #{interpolate.1} parent=39 // pred_fallthru
          _
      $region40: #{interpolate.1} parent=5 // pred_fallthru
        _
    $region6: #{interpolate.1} parent=1 // loop_footer
      %s16 = sadd.s32 1, %s12
    $region7: #{interpolate.1} parent=1 // loop_footer_branch
      %11 = sbr.rel target = $region3
    $region8: #{interpolate.1} parent=1 // loop_exit
      _
    %459 = vsyncpa [#allocation3], 1
    %s460 = scalar_lea.sflag [#allocation3], 1
    %461 = vsyncpa %s460, 1

</llo_original>
